<compile_context>
chip_gen: v7x
topology: tpu7x:2x2x1
jax: 0.10.0
libtpu: 0.0.40
codegen_flags: <defaults>
</compile_context>

<pallas_src>
import jax
import jax.numpy as jnp
from jax.experimental import pallas as pl
from jax.experimental.pallas import tpu as pltpu


_LANE = 128
_DEFAULT_TILE_B = 64 * 1024                 # 64K lanes per grid step
_DEFAULT_VMEM_LIMIT = 48 * 1024 * 1024      # fits v7x's 64 MiB physical VMEM


def _round_up(x, m):
    return ((x + m - 1) // m) * m


def pima_kernel(xT_ref,
                w1_ref, b1_ref,
                w2_ref, b2_ref,
                w3_ref, b3_ref,
                w4_ref, b4_ref,
                oT_ref):
    # Batch on lanes (last dim), features on sublanes.
    xT = xT_ref[...]                                                   # (8, TILE_B)

    # Linear(8 -> 12) + ReLU
    h = jnp.dot(w1_ref[...], xT, preferred_element_type=jnp.float32) + b1_ref[...]
    h = jnp.maximum(h, 0.0)                                            # (12, TILE_B)

    # Linear(12 -> 16) + ReLU   (dropout1 == identity at inference)
    h = jnp.dot(w2_ref[...], h, preferred_element_type=jnp.float32) + b2_ref[...]
    h = jnp.maximum(h, 0.0)                                            # (16, TILE_B)

    # Linear(16 -> 8) + ReLU    (dropout2 == identity at inference)
    h = jnp.dot(w3_ref[...], h, preferred_element_type=jnp.float32) + b3_ref[...]
    h = jnp.maximum(h, 0.0)                                            # (8, TILE_B)

    # Linear(8 -> 1) + Sigmoid  -> lane-dense (1, TILE_B) store
    y = jnp.dot(w4_ref[...], h, preferred_element_type=jnp.float32) + b4_ref[...]
    oT_ref[...] = jax.nn.sigmoid(y).astype(oT_ref.dtype)               # (1, TILE_B)


def pima_forward_T(xT, params, *,
                   tile_b=_DEFAULT_TILE_B,
                   vmem_limit_bytes=_DEFAULT_VMEM_LIMIT,
                   input_dtype=jnp.float32):
    """Feature-major entry point: xT (8, B) -> (1, B).

    No wrapper-side transposes; only a (tiny, <= n_tiles*128 column) zero-pad
    when B isn't a multiple of the balanced lane tile. Rows (columns of xT) are
    independent, so padding is harmless and sliced off.
    """
    F, B = xT.shape
    assert F == 8, f"expected 8 input features, got {F}"

    xT = xT.astype(input_dtype)

    # Balanced lane tiling: multiple of 128, capped by the batch, and evened
    # out across grid steps (keeps v7x's two TensorCores load-balanced).
    tile_b = max(_LANE, _round_up(min(int(tile_b), B), _LANE))
    n_tiles = pl.cdiv(B, tile_b)
    tile_b = _round_up(pl.cdiv(B, n_tiles), _LANE)
    b_pad = n_tiles * tile_b
    if b_pad != B:
        xT = jnp.pad(xT, ((0, 0), (0, b_pad - B)))

    w1, b1 = params["w1"], params["b1"]
    w2, b2 = params["w2"], params["b2"]
    w3, b3 = params["w3"], params["b3"]
    w4, b4 = params["w4"], params["b4"]

    # Weights/biases: tiny, keep the full array resident across all grid steps.
    def full(a):
        return pl.BlockSpec(a.shape, lambda i, _nd=a.ndim: (0,) * _nd)

    outT = pl.pallas_call(
        pima_kernel,
        out_shape=jax.ShapeDtypeStruct((1, b_pad), jnp.float32),
        grid=(n_tiles,),
        in_specs=[
            # x^T batch tiles. If profiling shows exposed input DMA at large
            # tiles, add pipeline_mode=pl.Buffered(3) here (inputs only).
            pl.BlockSpec((8, tile_b), lambda i: (0, i)),
            full(w1), full(b1),
            full(w2), full(b2),
            full(w3), full(b3),
            full(w4), full(b4),
        ],
        out_specs=pl.BlockSpec((1, tile_b), lambda i: (0, i)),
        compiler_params=pltpu.CompilerParams(
            # Batch tiles are independent -> shard across v7x's 2 TensorCores;
            # harmless no-op on single-TC v5e/v6e.
            dimension_semantics=("parallel",),
            # Raise the scoped VMEM limit (16/32 MiB defaults) so 64K-wide
            # double-buffered tiles fit; 48 MiB still leaves headroom under
            # v7x's 64 MiB physical VMEM.
            vmem_limit_bytes=vmem_limit_bytes,
        ),
    )(xT, w1, b1, w2, b2, w3, b3, w4, b4)

    return outT[:, :B] if b_pad != B else outT                         # (1, B)


def pima_forward(x, params, *,
                 tile_b=_DEFAULT_TILE_B,
                 vmem_limit_bytes=_DEFAULT_VMEM_LIMIT,
                 input_dtype=jnp.float32):
    """Convenience wrapper for the PyTorch-style (B, 8) -> (B, 1) interface.

    The transposes here are wrapper-side HBM passes; producers/consumers that
    can work in feature-major layout should call `pima_forward_T` directly.
    """
    B = x.shape[0]
    outT = pima_forward_T(jnp.asarray(x).T, params, tile_b=tile_b,
                          vmem_limit_bytes=vmem_limit_bytes,
                          input_dtype=input_dtype)
    out = outT.T                                                        # (B, 1)
    assert out.shape == (B, 1)
    return out


def xavier_normal(key, fan_in, fan_out):
    # PyTorch nn.init.xavier_normal_: std = sqrt(2 / (fan_in + fan_out)).
    # Stored in PyTorch (out, in) orientation; kernel computes W @ x^T.
    std = jnp.sqrt(2.0 / (fan_in + fan_out))
    return std * jax.random.normal(key, (fan_out, fan_in), dtype=jnp.float32)


def linear_bias(key, fan_in, fan_out):
    # PyTorch Linear default bias init: U(-1/sqrt(fan_in), 1/sqrt(fan_in)).
    # Stored as an (out, 1) column so it broadcasts over the lane (batch) axis.
    bound = 1.0 / jnp.sqrt(jnp.float32(fan_in))
    return jax.random.uniform(key, (fan_out, 1), dtype=jnp.float32,
                              minval=-bound, maxval=bound)


def init_params(key):
    keys = jax.random.split(key, 8)
    return {
        "w1": xavier_normal(keys[0], 8, 12),  "b1": linear_bias(keys[1], 8, 12),
        "w2": xavier_normal(keys[2], 12, 16), "b2": linear_bias(keys[3], 12, 16),
        "w3": xavier_normal(keys[4], 16, 8),  "b3": linear_bias(keys[5], 16, 8),
        "w4": xavier_normal(keys[6], 8, 1),   "b4": linear_bias(keys[7], 8, 1),
    }


def reference_forward(x, p):
    # Pure-JAX reference in the standard (batch, features) orientation.
    dot = lambda a, b: jnp.dot(a, b, precision=jax.lax.Precision.HIGHEST)
    h = jnp.maximum(dot(x, p["w1"].T) + p["b1"].T, 0.0)
    h = jnp.maximum(dot(h, p["w2"].T) + p["b2"].T, 0.0)
    h = jnp.maximum(dot(h, p["w3"].T) + p["b3"].T, 0.0)
    return jax.nn.sigmoid(dot(h, p["w4"].T) + p["b4"].T)


if __name__ == "__main__":
    key = jax.random.PRNGKey(0)
    k_params, k_x = jax.random.split(key)

    params = init_params(k_params)

    # Small demo shapes; real workloads should use the default tile_b=64K.
    B = 1000
    x = jax.random.normal(k_x, (B, 8), dtype=jnp.float32)
    ref = reference_forward(x, params)

    # Path 1: PyTorch-style (B, 8) interface. Non-multiple batch exercises the
    # pad + rebalanced 4-step grid (tile_b clamps/balances to 256).
    out = jax.block_until_ready(pima_forward(x, params, tile_b=256))
    assert out.shape == (B, 1)
    assert jnp.allclose(out, ref, atol=1e-4, rtol=1e-4), "mismatch vs reference (BxF path)"

    # Path 2: feature-major (8, B) zero-copy interface, 2 balanced tiles,
    # no padding, no output transpose.
    xT = jnp.asarray(x[:512]).T                                        # (8, 512)
    outT = jax.block_until_ready(pima_forward_T(xT, params, tile_b=256))
    assert outT.shape == (1, 512)
    assert jnp.allclose(outT, ref[:512].T, atol=1e-4, rtol=1e-4), \
        "mismatch vs reference (feature-major path)"

    print("KERNEL_OK")
</pallas_src>

<mosaic_0001>
module attributes {stable_mosaic.version = 11 : i64} {
  func.func @pima_kernel(%arg0: i32, %arg1: memref<8x256xf32, #tpu.memory_space<vmem>>, %arg2: memref<12x8xf32, #tpu.memory_space<vmem>>, %arg3: memref<12x1xf32, #tpu.memory_space<vmem>>, %arg4: memref<16x12xf32, #tpu.memory_space<vmem>>, %arg5: memref<16x1xf32, #tpu.memory_space<vmem>>, %arg6: memref<8x16xf32, #tpu.memory_space<vmem>>, %arg7: memref<8x1xf32, #tpu.memory_space<vmem>>, %arg8: memref<1x8xf32, #tpu.memory_space<vmem>>, %arg9: memref<1x1xf32, #tpu.memory_space<vmem>>, %arg10: memref<1x256xf32, #tpu.memory_space<vmem>>) attributes {dimension_semantics = [#tpu.dimension_semantics<parallel>], iteration_bounds = array<i64: 4>, scalar_prefetch = 0 : i64, scratch_operands = 0 : i64, tpu.core_type = #tpu.core_type<tc>, window_params = [{transform_indices = @transform_0, window_bounds = array<i64: 8, 256>}, {pipeline_mode = #tpu.pipeline_mode<synchronous>, transform_indices = @transform_1, window_bounds = array<i64: 12, 8>}, {pipeline_mode = #tpu.pipeline_mode<synchronous>, transform_indices = @transform_2, window_bounds = array<i64: 12, 1>}, {pipeline_mode = #tpu.pipeline_mode<synchronous>, transform_indices = @transform_3, window_bounds = array<i64: 16, 12>}, {pipeline_mode = #tpu.pipeline_mode<synchronous>, transform_indices = @transform_4, window_bounds = array<i64: 16, 1>}, {pipeline_mode = #tpu.pipeline_mode<synchronous>, transform_indices = @transform_5, window_bounds = array<i64: 8, 16>}, {pipeline_mode = #tpu.pipeline_mode<synchronous>, transform_indices = @transform_6, window_bounds = array<i64: 8, 1>}, {pipeline_mode = #tpu.pipeline_mode<synchronous>, transform_indices = @transform_7, window_bounds = array<i64: 1, 8>}, {pipeline_mode = #tpu.pipeline_mode<synchronous>, transform_indices = @transform_8, window_bounds = array<i64: 1, 1>}, {transform_indices = @transform_9, window_bounds = array<i64: 1, 256>}]} {
    %c0 = arith.constant 0 : index
    %c0_0 = arith.constant 0 : index
    %0 = vector.load %arg1[%c0, %c0_0] : memref<8x256xf32, #tpu.memory_space<vmem>>, vector<8x256xf32>
    %c0_1 = arith.constant 0 : index
    %c0_2 = arith.constant 0 : index
    %1 = vector.load %arg2[%c0_1, %c0_2] : memref<12x8xf32, #tpu.memory_space<vmem>>, vector<12x8xf32>
    %cst = arith.constant dense<0.000000e+00> : vector<12x256xf32>
    %2 = tpu.matmul %1, %0, %cst {dimension_numbers = #tpu.dot_dimension_numbers<[1], [0], [0], [1], [0, 0, 1, 1], [], []>} : vector<12x8xf32>, vector<8x256xf32>, vector<12x256xf32> -> vector<12x256xf32>
    %c0_3 = arith.constant 0 : index
    %c0_4 = arith.constant 0 : index
    %3 = vector.load %arg3[%c0_3, %c0_4] : memref<12x1xf32, #tpu.memory_space<vmem>>, vector<12x1xf32>
    %4 = vector.broadcast %3 : vector<12x1xf32> to vector<12x256xf32>
    %5 = arith.addf %2, %4 : vector<12x256xf32>
    %cst_5 = arith.constant 0.000000e+00 : f32
    %6 = vector.broadcast %cst_5 : f32 to vector<12x256xf32>
    %7 = arith.maximumf %5, %6 : vector<12x256xf32>
    %c0_6 = arith.constant 0 : index
    %c0_7 = arith.constant 0 : index
    %8 = vector.load %arg4[%c0_6, %c0_7] : memref<16x12xf32, #tpu.memory_space<vmem>>, vector<16x12xf32>
    %cst_8 = arith.constant dense<0.000000e+00> : vector<16x256xf32>
    %9 = tpu.matmul %8, %7, %cst_8 {dimension_numbers = #tpu.dot_dimension_numbers<[1], [0], [0], [1], [0, 0, 1, 1], [], []>} : vector<16x12xf32>, vector<12x256xf32>, vector<16x256xf32> -> vector<16x256xf32>
    %c0_9 = arith.constant 0 : index
    %c0_10 = arith.constant 0 : index
    %10 = vector.load %arg5[%c0_9, %c0_10] : memref<16x1xf32, #tpu.memory_space<vmem>>, vector<16x1xf32>
    %11 = vector.broadcast %10 : vector<16x1xf32> to vector<16x256xf32>
    %12 = arith.addf %9, %11 : vector<16x256xf32>
    %cst_11 = arith.constant 0.000000e+00 : f32
    %13 = vector.broadcast %cst_11 : f32 to vector<16x256xf32>
    %14 = arith.maximumf %12, %13 : vector<16x256xf32>
    %c0_12 = arith.constant 0 : index
    %c0_13 = arith.constant 0 : index
    %15 = vector.load %arg6[%c0_12, %c0_13] : memref<8x16xf32, #tpu.memory_space<vmem>>, vector<8x16xf32>
    %cst_14 = arith.constant dense<0.000000e+00> : vector<8x256xf32>
    %16 = tpu.matmul %15, %14, %cst_14 {dimension_numbers = #tpu.dot_dimension_numbers<[1], [0], [0], [1], [0, 0, 1, 1], [], []>} : vector<8x16xf32>, vector<16x256xf32>, vector<8x256xf32> -> vector<8x256xf32>
    %c0_15 = arith.constant 0 : index
    %c0_16 = arith.constant 0 : index
    %17 = vector.load %arg7[%c0_15, %c0_16] : memref<8x1xf32, #tpu.memory_space<vmem>>, vector<8x1xf32>
    %18 = vector.broadcast %17 : vector<8x1xf32> to vector<8x256xf32>
    %19 = arith.addf %16, %18 : vector<8x256xf32>
    %cst_17 = arith.constant 0.000000e+00 : f32
    %20 = vector.broadcast %cst_17 : f32 to vector<8x256xf32>
    %21 = arith.maximumf %19, %20 : vector<8x256xf32>
    %c0_18 = arith.constant 0 : index
    %c0_19 = arith.constant 0 : index
    %22 = vector.load %arg8[%c0_18, %c0_19] : memref<1x8xf32, #tpu.memory_space<vmem>>, vector<1x8xf32>
    %cst_20 = arith.constant dense<0.000000e+00> : vector<1x256xf32>
    %23 = tpu.matmul %22, %21, %cst_20 {dimension_numbers = #tpu.dot_dimension_numbers<[1], [0], [0], [1], [0, 0, 1, 1], [], []>} : vector<1x8xf32>, vector<8x256xf32>, vector<1x256xf32> -> vector<1x256xf32>
    %c0_21 = arith.constant 0 : index
    %c0_22 = arith.constant 0 : index
    %24 = vector.load %arg9[%c0_21, %c0_22] : memref<1x1xf32, #tpu.memory_space<vmem>>, vector<1x1xf32>
    %25 = vector.broadcast %24 : vector<1x1xf32> to vector<1x256xf32>
    %26 = arith.addf %23, %25 : vector<1x256xf32>
    %27 = arith.negf %26 : vector<1x256xf32>
    %28 = math.exp %27 : vector<1x256xf32>
    %cst_23 = arith.constant 1.000000e+00 : f32
    %29 = vector.broadcast %cst_23 : f32 to vector<1x256xf32>
    %30 = arith.addf %29, %28 : vector<1x256xf32>
    %31 = arith.divf %29, %30 : vector<1x256xf32>
    %c0_24 = arith.constant 0 : index
    %c0_25 = arith.constant 0 : index
    %32 = vector.load %arg10[%c0_24, %c0_25] : memref<1x256xf32, #tpu.memory_space<vmem>>, vector<1x256xf32>
    tpu.vector_store %arg10[%c0_24, %c0_25], %31 {strides = array<i32>} : memref<1x256xf32, #tpu.memory_space<vmem>>, vector<1x256xf32>,
    return
  }
  func.func @transform_0(%arg0: i32) -> (i32, i32) {
    %c0_i32 = arith.constant 0 : i32
    %c0_i32_0 = arith.constant 0 : i32
    return %c0_i32, %arg0 : i32, i32
  }
  func.func @transform_1(%arg0: i32) -> (i32, i32) {
    %c0_i32 = arith.constant 0 : i32
    %c0_i32_0 = arith.constant 0 : i32
    %c0_i32_1 = arith.constant 0 : i32
    return %c0_i32, %c0_i32_0 : i32, i32
  }
  func.func @transform_2(%arg0: i32) -> (i32, i32) {
    %c0_i32 = arith.constant 0 : i32
    %c0_i32_0 = arith.constant 0 : i32
    %c0_i32_1 = arith.constant 0 : i32
    return %c0_i32, %c0_i32_0 : i32, i32
  }
  func.func @transform_3(%arg0: i32) -> (i32, i32) {
    %c0_i32 = arith.constant 0 : i32
    %c0_i32_0 = arith.constant 0 : i32
    %c0_i32_1 = arith.constant 0 : i32
    return %c0_i32, %c0_i32_0 : i32, i32
  }
  func.func @transform_4(%arg0: i32) -> (i32, i32) {
    %c0_i32 = arith.constant 0 : i32
    %c0_i32_0 = arith.constant 0 : i32
    %c0_i32_1 = arith.constant 0 : i32
    return %c0_i32, %c0_i32_0 : i32, i32
  }
  func.func @transform_5(%arg0: i32) -> (i32, i32) {
    %c0_i32 = arith.constant 0 : i32
    %c0_i32_0 = arith.constant 0 : i32
    %c0_i32_1 = arith.constant 0 : i32
    return %c0_i32, %c0_i32_0 : i32, i32
  }
  func.func @transform_6(%arg0: i32) -> (i32, i32) {
    %c0_i32 = arith.constant 0 : i32
    %c0_i32_0 = arith.constant 0 : i32
    %c0_i32_1 = arith.constant 0 : i32
    return %c0_i32, %c0_i32_0 : i32, i32
  }
  func.func @transform_7(%arg0: i32) -> (i32, i32) {
    %c0_i32 = arith.constant 0 : i32
    %c0_i32_0 = arith.constant 0 : i32
    %c0_i32_1 = arith.constant 0 : i32
    return %c0_i32, %c0_i32_0 : i32, i32
  }
  func.func @transform_8(%arg0: i32) -> (i32, i32) {
    %c0_i32 = arith.constant 0 : i32
    %c0_i32_0 = arith.constant 0 : i32
    %c0_i32_1 = arith.constant 0 : i32
    return %c0_i32, %c0_i32_0 : i32, i32
  }
  func.func @transform_9(%arg0: i32) -> (i32, i32) {
    %c0_i32 = arith.constant 0 : i32
    %c0_i32_0 = arith.constant 0 : i32
    return %c0_i32, %arg0 : i32, i32
  }
}

</mosaic_0001>

<llo_original>
// kernel: tpu_custom_call.1
$region0: #{tpu_custom_call.1}
  #allocation0 [shape = 'u32[]', space=smem, size = 0x4, offset = 0x4, fixed_abs, tag = 'smem constant byte address 0x4 - core index']
  #allocation1 [shape = 'u32[144,128]{1,0:T(1,128)}', space=vmem, size = 0x12000, scoped, tag = 'internal scratch']
  #allocation2 [shape = 'f32[1,1]{1,0:T(1,128)S(1)}', space=vmem, size = 0x200, scoped, tag = 'scoped memory for tpu_custom_call.1']
  %s0 = inlined_call_operand.vmem [shape: f32[8,1024], index: 0, kind: input, shape index: {}]
  %s1 = inlined_call_operand.vmem [shape: f32[12,8], index: 1, kind: input, shape index: {}]
  %s2 = inlined_call_operand.vmem [shape: f32[12,1], index: 2, kind: input, shape index: {}]
  %s3 = inlined_call_operand.vmem [shape: f32[16,12], index: 3, kind: input, shape index: {}]
  %s4 = inlined_call_operand.vmem [shape: f32[16,1], index: 4, kind: input, shape index: {}]
  %s5 = inlined_call_operand.vmem [shape: f32[8,16], index: 5, kind: input, shape index: {}]
  %s6 = inlined_call_operand.vmem [shape: f32[8,1], index: 6, kind: input, shape index: {}]
  %s7 = inlined_call_operand.vmem [shape: f32[1,8], index: 7, kind: input, shape index: {}]
  %s8 = inlined_call_operand.<no memory space> [shape: f32[1,1], index: 8, kind: input, shape index: {}]
  %s9 = inlined_call_operand.hbm [shape: f32[1,1024], index: 9, kind: output, shape index: {}]
  %s10 = sld [smem:[#allocation0]]
  $region69: #{tpu_custom_call.1} parent=0
    _
  %s12 = ssub.s32 1, %s10
  %s13 = scalar_select 0, %s12, %s10
  %v14 = vstv %s8
  %15 = vst [vmem:[#allocation2] sm:$0x1] %v14
  $region1: #{tpu_custom_call.1} parent=0
    #allocation3 [shape = 'u8[2048]{0}', space=vmem, size = 0x800, scoped, tag = 'output window, operand 0']
    #allocation4 [shape = 's32[2]{0}', space=sflag, size = 0x8, scoped, tag = 'scoped memory for tpu_custom_call.1']
    %16 = vsyncpa [#allocation4], 0
    %s17 = scalar_lea.sflag [#allocation4], 1
    %18 = vsyncpa %s17, 0
    loop: start=0, step=1, limit=6
    $region2: #{tpu_custom_call.1} parent=1 // loop_pre_header
      _
    $region3: #{tpu_custom_call.1} parent=1 // loop_header
      %s20 = sphi 0, %s24
      %p21 = scmp.ge.s32.totalorder %s20, 6
      %s30 = sphi 0, %s32
      %s33 = sphi 0, %s30
      %s34 = sphi 0, %s33
      %s50 = sphi 0, %s34
      %s54 = sphi 0, %s54
      %s56 = sphi 0, %s54
      %s57 = sphi 0, %s56
      %s71 = sphi 0, %s57
      %s75 = sphi 0, %s75
      %s77 = sphi 0, %s75
      %s78 = sphi 0, %s77
      %s92 = sphi 0, %s78
      %s96 = sphi 0, %s96
      %s98 = sphi 0, %s96
      %s99 = sphi 0, %s98
      %s113 = sphi 0, %s99
      %s117 = sphi 0, %s117
      %s119 = sphi 0, %s117
      %s120 = sphi 0, %s119
      %s134 = sphi 0, %s120
      %s138 = sphi 0, %s138
      %s140 = sphi 0, %s138
      %s141 = sphi 0, %s140
      %s155 = sphi 0, %s141
      %s159 = sphi 0, %s159
      %s161 = sphi 0, %s159
      %s162 = sphi 0, %s161
      %s176 = sphi 0, %s162
      %s180 = sphi 0, %s180
      %s182 = sphi 0, %s180
      %s183 = sphi 0, %s182
      %s197 = sphi 0, %s183
      %s201 = sphi 0, %s201
      %s203 = sphi 0, %s201
      %s204 = sphi 0, %s203
      %s218 = sphi 0, %s204
      %s224 = sphi 0, %s226
      %s227 = sphi 0, %s224
      %s228 = sphi 0, %s227
      %s244 = sphi 0, %s228
    $region4: #{tpu_custom_call.1} parent=1 // loop_header_branch
      %23 = sbr.rel (%p21) target = $region8
    $region5: #{tpu_custom_call.1} parent=1 // loop_body
      %s25 = ssub.s32 %s20, 1
      %s26 = ssub.s32 %s20, 2
      %s27 = sadd.s32 %s20, 1
      %s28 = ssub.s32 %s20, %s27
      %p29 = scmp.eq.s32.totalorder %s28, 0
      %s31 = sadd.s32 %s30, 1
      %s32 = scalar_select %p29, %s30, %s31
      %p35 = pneg %p29
      %p36 = scmp.eq.s32.totalorder %s20, 3
      %p37 = por %p35, %p36
      %p38 = scmp.ne.s32.totalorder %s30, %s33
      %p39 = scmp.eq.s32.totalorder %s20, 0
      %p40 = por %p38, %p39
      %p41 = scmp.ne.s32.totalorder %s30, %s33
      %p42 = scmp.eq.s32.totalorder %s25, 3
      %p43 = por %p41, %p42
      %p44 = scmp.ne.s32.totalorder %s33, %s34
      %p45 = scmp.eq.s32.totalorder %s25, 0
      %p46 = por %p44, %p45
      %p47 = scmp.ne.s32.totalorder %s33, %s34
      %p48 = scmp.eq.s32.totalorder %s26, 3
      %p49 = por %p47, %p48
      %p51 = scmp.ne.s32.totalorder %s34, %s50
      %p52 = scmp.eq.s32.totalorder %s26, 0
      %p53 = por %p51, %p52
      %s55 = sadd.s32 %s54, 1
      %p58 = scmp.eq.s32.totalorder %s20, 3
      %p59 = scmp.ne.s32.totalorder %s54, %s56
      %p60 = scmp.eq.s32.totalorder %s20, 0
      %p61 = por %p59, %p60
      %p62 = scmp.ne.s32.totalorder %s54, %s56
      %p63 = scmp.eq.s32.totalorder %s25, 3
      %p64 = por %p62, %p63
      %p65 = scmp.ne.s32.totalorder %s56, %s57
      %p66 = scmp.eq.s32.totalorder %s25, 0
      %p67 = por %p65, %p66
      %p68 = scmp.ne.s32.totalorder %s56, %s57
      %p69 = scmp.eq.s32.totalorder %s26, 3
      %p70 = por %p68, %p69
      %p72 = scmp.ne.s32.totalorder %s57, %s71
      %p73 = scmp.eq.s32.totalorder %s26, 0
      %p74 = por %p72, %p73
      %s76 = sadd.s32 %s75, 1
      %p79 = scmp.eq.s32.totalorder %s20, 3
      %p80 = scmp.ne.s32.totalorder %s75, %s77
      %p81 = scmp.eq.s32.totalorder %s20, 0
      %p82 = por %p80, %p81
      %p83 = scmp.ne.s32.totalorder %s75, %s77
      %p84 = scmp.eq.s32.totalorder %s25, 3
      %p85 = por %p83, %p84
      %p86 = scmp.ne.s32.totalorder %s77, %s78
      %p87 = scmp.eq.s32.totalorder %s25, 0
      %p88 = por %p86, %p87
      %p89 = scmp.ne.s32.totalorder %s77, %s78
      %p90 = scmp.eq.s32.totalorder %s26, 3
      %p91 = por %p89, %p90
      %p93 = scmp.ne.s32.totalorder %s78, %s92
      %p94 = scmp.eq.s32.totalorder %s26, 0
      %p95 = por %p93, %p94
      %s97 = sadd.s32 %s96, 1
      %p100 = scmp.eq.s32.totalorder %s20, 3
      %p101 = scmp.ne.s32.totalorder %s96, %s98
      %p102 = scmp.eq.s32.totalorder %s20, 0
      %p103 = por %p101, %p102
      %p104 = scmp.ne.s32.totalorder %s96, %s98
      %p105 = scmp.eq.s32.totalorder %s25, 3
      %p106 = por %p104, %p105
      %p107 = scmp.ne.s32.totalorder %s98, %s99
      %p108 = scmp.eq.s32.totalorder %s25, 0
      %p109 = por %p107, %p108
      %p110 = scmp.ne.s32.totalorder %s98, %s99
      %p111 = scmp.eq.s32.totalorder %s26, 3
      %p112 = por %p110, %p111
      %p114 = scmp.ne.s32.totalorder %s99, %s113
      %p115 = scmp.eq.s32.totalorder %s26, 0
      %p116 = por %p114, %p115
      %s118 = sadd.s32 %s117, 1
      %p121 = scmp.eq.s32.totalorder %s20, 3
      %p122 = scmp.ne.s32.totalorder %s117, %s119
      %p123 = scmp.eq.s32.totalorder %s20, 0
      %p124 = por %p122, %p123
      %p125 = scmp.ne.s32.totalorder %s117, %s119
      %p126 = scmp.eq.s32.totalorder %s25, 3
      %p127 = por %p125, %p126
      %p128 = scmp.ne.s32.totalorder %s119, %s120
      %p129 = scmp.eq.s32.totalorder %s25, 0
      %p130 = por %p128, %p129
      %p131 = scmp.ne.s32.totalorder %s119, %s120
      %p132 = scmp.eq.s32.totalorder %s26, 3
      %p133 = por %p131, %p132
      %p135 = scmp.ne.s32.totalorder %s120, %s134
      %p136 = scmp.eq.s32.totalorder %s26, 0
      %p137 = por %p135, %p136
      %s139 = sadd.s32 %s138, 1
      %p142 = scmp.eq.s32.totalorder %s20, 3
      %p143 = scmp.ne.s32.totalorder %s138, %s140
      %p144 = scmp.eq.s32.totalorder %s20, 0
      %p145 = por %p143, %p144
      %p146 = scmp.ne.s32.totalorder %s138, %s140
      %p147 = scmp.eq.s32.totalorder %s25, 3
      %p148 = por %p146, %p147
      %p149 = scmp.ne.s32.totalorder %s140, %s141
      %p150 = scmp.eq.s32.totalorder %s25, 0
      %p151 = por %p149, %p150
      %p152 = scmp.ne.s32.totalorder %s140, %s141
      %p153 = scmp.eq.s32.totalorder %s26, 3
      %p154 = por %p152, %p153
      %p156 = scmp.ne.s32.totalorder %s141, %s155
      %p157 = scmp.eq.s32.totalorder %s26, 0
      %p158 = por %p156, %p157
      %s160 = sadd.s32 %s159, 1
      %p163 = scmp.eq.s32.totalorder %s20, 3
      %p164 = scmp.ne.s32.totalorder %s159, %s161
      %p165 = scmp.eq.s32.totalorder %s20, 0
      %p166 = por %p164, %p165
      %p167 = scmp.ne.s32.totalorder %s159, %s161
      %p168 = scmp.eq.s32.totalorder %s25, 3
      %p169 = por %p167, %p168
      %p170 = scmp.ne.s32.totalorder %s161, %s162
      %p171 = scmp.eq.s32.totalorder %s25, 0
      %p172 = por %p170, %p171
      %p173 = scmp.ne.s32.totalorder %s161, %s162
      %p174 = scmp.eq.s32.totalorder %s26, 3
      %p175 = por %p173, %p174
      %p177 = scmp.ne.s32.totalorder %s162, %s176
      %p178 = scmp.eq.s32.totalorder %s26, 0
      %p179 = por %p177, %p178
      %s181 = sadd.s32 %s180, 1
      %p184 = scmp.eq.s32.totalorder %s20, 3
      %p185 = scmp.ne.s32.totalorder %s180, %s182
      %p186 = scmp.eq.s32.totalorder %s20, 0
      %p187 = por %p185, %p186
      %p188 = scmp.ne.s32.totalorder %s180, %s182
      %p189 = scmp.eq.s32.totalorder %s25, 3
      %p190 = por %p188, %p189
      %p191 = scmp.ne.s32.totalorder %s182, %s183
      %p192 = scmp.eq.s32.totalorder %s25, 0
      %p193 = por %p191, %p192
      %p194 = scmp.ne.s32.totalorder %s182, %s183
      %p195 = scmp.eq.s32.totalorder %s26, 3
      %p196 = por %p194, %p195
      %p198 = scmp.ne.s32.totalorder %s183, %s197
      %p199 = scmp.eq.s32.totalorder %s26, 0
      %p200 = por %p198, %p199
      %s202 = sadd.s32 %s201, 1
      %p205 = scmp.eq.s32.totalorder %s20, 3
      %p206 = scmp.ne.s32.totalorder %s201, %s203
      %p207 = scmp.eq.s32.totalorder %s20, 0
      %p208 = por %p206, %p207
      %p209 = scmp.ne.s32.totalorder %s201, %s203
      %p210 = scmp.eq.s32.totalorder %s25, 3
      %p211 = por %p209, %p210
      %p212 = scmp.ne.s32.totalorder %s203, %s204
      %p213 = scmp.eq.s32.totalorder %s25, 0
      %p214 = por %p212, %p213
      %p215 = scmp.ne.s32.totalorder %s203, %s204
      %p216 = scmp.eq.s32.totalorder %s26, 3
      %p217 = por %p215, %p216
      %p219 = scmp.ne.s32.totalorder %s204, %s218
      %p220 = scmp.eq.s32.totalorder %s26, 0
      %p221 = por %p219, %p220
      %s222 = ssub.s32 %s20, %s27
      %p223 = scmp.eq.s32.totalorder %s222, 0
      %s225 = sadd.s32 %s224, 1
      %s226 = scalar_select %p223, %s224, %s225
      %p229 = pneg %p223
      %p230 = scmp.eq.s32.totalorder %s20, 3
      %p231 = por %p229, %p230
      %p232 = scmp.ne.s32.totalorder %s224, %s227
      %p233 = scmp.eq.s32.totalorder %s20, 0
      %p234 = por %p232, %p233
      %p235 = scmp.ne.s32.totalorder %s224, %s227
      %p236 = scmp.eq.s32.totalorder %s25, 3
      %p237 = por %p235, %p236
      %p238 = scmp.ne.s32.totalorder %s227, %s228
      %p239 = scmp.eq.s32.totalorder %s25, 0
      %p240 = por %p238, %p239
      %p241 = scmp.ne.s32.totalorder %s227, %s228
      %p242 = scmp.eq.s32.totalorder %s26, 3
      %p243 = por %p241, %p242
      %p245 = scmp.ne.s32.totalorder %s228, %s244
      %p246 = scmp.eq.s32.totalorder %s26, 0
      %p247 = por %p245, %p246
      %p248 = scmp.le.s32.totalorder 1, %s20
      %p249 = scmp.lt.s32.totalorder %s20, 5
      %p250 = pnand %p248, %p249
      %p251 = pneg %p250
      // Predicated region
      $region9: #{tpu_custom_call.1} parent=5 // pred_check
        _
      $region10: #{tpu_custom_call.1} parent=5 // pred_check_branch
        %253 = sbr.rel (%p250) target = $region12
      $region11: #{tpu_custom_call.1} parent=5 // pred_region
        %s254 = ssub.s32 %s20, 1
        // Predicated region
        $region13: #{tpu_custom_call.1} parent=11 // pred_check
          %p255 = pneg %p67
        $region14: #{tpu_custom_call.1} parent=11 // pred_check_branch
          %257 = sbr.rel (%p255) target = $region16
        $region15: #{tpu_custom_call.1} parent=11 // pred_region
          _
        $region16: #{tpu_custom_call.1} parent=11 // pred_fallthru
          _
        // Predicated region
        $region17: #{tpu_custom_call.1} parent=11 // pred_check
          %p258 = pneg %p88
        $region18: #{tpu_custom_call.1} parent=11 // pred_check_branch
          %260 = sbr.rel (%p258) target = $region20
        $region19: #{tpu_custom_call.1} parent=11 // pred_region
          _
        $region20: #{tpu_custom_call.1} parent=11 // pred_fallthru
          _
        // Predicated region
        $region21: #{tpu_custom_call.1} parent=11 // pred_check
          %p261 = pneg %p109
        $region22: #{tpu_custom_call.1} parent=11 // pred_check_branch
          %263 = sbr.rel (%p261) target = $region24
        $region23: #{tpu_custom_call.1} parent=11 // pred_region
          _
        $region24: #{tpu_custom_call.1} parent=11 // pred_fallthru
          _
        // Predicated region
        $region25: #{tpu_custom_call.1} parent=11 // pred_check
          %p264 = pneg %p130
        $region26: #{tpu_custom_call.1} parent=11 // pred_check_branch
          %266 = sbr.rel (%p264) target = $region28
        $region27: #{tpu_custom_call.1} parent=11 // pred_region
          _
        $region28: #{tpu_custom_call.1} parent=11 // pred_fallthru
          _
        // Predicated region
        $region29: #{tpu_custom_call.1} parent=11 // pred_check
          %p267 = pneg %p151
        $region30: #{tpu_custom_call.1} parent=11 // pred_check_branch
          %269 = sbr.rel (%p267) target = $region32
        $region31: #{tpu_custom_call.1} parent=11 // pred_region
          _
        $region32: #{tpu_custom_call.1} parent=11 // pred_fallthru
          _
        // Predicated region
        $region33: #{tpu_custom_call.1} parent=11 // pred_check
          %p270 = pneg %p172
        $region34: #{tpu_custom_call.1} parent=11 // pred_check_branch
          %272 = sbr.rel (%p270) target = $region36
        $region35: #{tpu_custom_call.1} parent=11 // pred_region
          _
        $region36: #{tpu_custom_call.1} parent=11 // pred_fallthru
          _
        // Predicated region
        $region37: #{tpu_custom_call.1} parent=11 // pred_check
          %p273 = pneg %p193
        $region38: #{tpu_custom_call.1} parent=11 // pred_check_branch
          %275 = sbr.rel (%p273) target = $region40
        $region39: #{tpu_custom_call.1} parent=11 // pred_region
          _
        $region40: #{tpu_custom_call.1} parent=11 // pred_fallthru
          _
        // Predicated region
        $region41: #{tpu_custom_call.1} parent=11 // pred_check
          %p276 = pneg %p214
        $region42: #{tpu_custom_call.1} parent=11 // pred_check_branch
          %278 = sbr.rel (%p276) target = $region44
        $region43: #{tpu_custom_call.1} parent=11 // pred_region
          _
        $region44: #{tpu_custom_call.1} parent=11 // pred_fallthru
          _
      $region12: #{tpu_custom_call.1} parent=5 // pred_fallthru
        _
      %p279 = scmp.lt.s32.totalorder %s20, 4
      // Predicated region
      $region45: #{tpu_custom_call.1} parent=5 // pred_check
        %p280 = pneg %p279
      $region46: #{tpu_custom_call.1} parent=5 // pred_check_branch
        %282 = sbr.rel (%p280) target = $region48
      $region47: #{tpu_custom_call.1} parent=5 // pred_region
        // Predicated region
        $region49: #{tpu_custom_call.1} parent=47 // pred_check
          %p283 = pneg %p40
        $region50: #{tpu_custom_call.1} parent=47 // pred_check_branch
          %285 = sbr.rel (%p283) target = $region52
        $region51: #{tpu_custom_call.1} parent=47 // pred_region
          %s286 = smul.u32 2, %s20
          %p287 = scmp.lt.s32.totalorder %s286, 7
          %s288 = scalar_select %p287, %s286, 7
          %s289 = smul.addr %s288, 8
          %s290 = scalar_lea.vmem %s0, %s289
          %s291 = smul.u32 2, %s20
        $region52: #{tpu_custom_call.1} parent=47 // pred_fallthru
          _
      $region48: #{tpu_custom_call.1} parent=5 // pred_fallthru
        _
      %p292 = scmp.le.s32.totalorder 1, %s20
      %p293 = scmp.lt.s32.totalorder %s20, 5
      %p294 = pnand %p292, %p293
      %p295 = pneg %p294
      // Predicated region
      $region53: #{tpu_custom_call.1} parent=5 // pred_check
        _
      $region54: #{tpu_custom_call.1} parent=5 // pred_check_branch
        %297 = sbr.rel (%p294) target = $region56
      $region55: #{tpu_custom_call.1} parent=5 // pred_region
        %s298 = ssub.s32 %s20, 1
        %s299 = smul.u32 2, %s25
        %p300 = scmp.lt.s32.totalorder %s299, 7
        %s301 = scalar_select %p300, %s299, 7
        %s302 = smul.addr %s301, 8
        %s303 = scalar_lea.vmem %s0, %s302
        %p304 = pneg %p46
        %p305 = pneg %p43
        %p306 = pneg %p67
        %p307 = pneg %p64
        %p308 = pneg %p88
        %p309 = pneg %p85
        %p310 = pneg %p109
        %p311 = pneg %p106
        %p312 = pneg %p130
        %p313 = pneg %p127
        %p314 = pneg %p151
        %p315 = pneg %p148
        %p316 = pneg %p172
        %p317 = pneg %p169
        %p318 = pneg %p193
        %p319 = pneg %p190
        %p320 = pneg %p214
        %p321 = pneg %p211
        %p322 = pneg %p240
        %p323 = pneg %p237
        %s324 = sand.u32 %s227, 1
        %s325 = scalar_lea.sflag [#allocation4], %s324
        %s326 = sand.u32 %s227, 1
        %s327 = smul.addr %s326, 2
        %s328 = scalar_lea.vmem [#allocation3], %s327
        %s329 = smul.u32 2, %s25
        %p330 = scmp.lt.s32.totalorder %s329, 7
        %s331 = scalar_select %p330, %s329, 7
        %s332 = smul.addr %s331, 8
        %s333 = scalar_lea.vmem %s0, %s332
        %s334 = smul.u32 2, %s25
        %s335 = smul.u32 2, %s25
        %v336 = vld [vmem:[%s333] sm:$0xff]
        %v337 = vld [vmem:[%s333 + $0x8] sm:$0xff]
        %v338 = vld [vmem:[%s1] sm:$0xff]
        %v339 = vld [vmem:[%s1 + $0x8] sm:$0xf]
        %v340 = vld [vmem:[%s2] sm:$0xff]
        %v341 = vld [vmem:[%s2 + $0x8] sm:$0xf]
        %343 = vset.pattern.permute.xlu0 0
        %344 = vperm.xlu0 %343, %v340
        %v345 = vpop.permute.xlu0 %344
        %348 = vset.pattern.permute.xlu0 0
        %349 = vperm.xlu0 %348, %v341
        %v350 = vpop.permute.xlu0 %349
        %vm352 = vcmask 64512
        %v354 = vsel %vm352, %v338, 0
        %v357 = vsel %vm352, %v339, 0
        %359 = vmatprep.subr.mxu0 %v337
        %360 = vmatpush1.msra.mxu0 %v336
        %361 = vmatprep.subr.mxu0 0.0
        %362 = vmatpush1.msra.mxu0 0.0
        %363 = vmatprep.subr.mxu0 0.0
        %364 = vmatpush1.msra.mxu0 0.0
        %365 = vmatprep.subr.mxu0 0.0
        %366 = vmatpush1.msra.mxu0 0.0
        %367 = vmatprep.subr.mxu0 0.0
        %368 = vmatpush1.msra.mxu0 0.0
        %369 = vmatprep.subr.mxu0 0.0
        %370 = vmatpush1.msra.mxu0 0.0
        %371 = vmatprep.subr.mxu0 0.0
        %372 = vmatpush1.msra.mxu0 0.0
        %373 = vmatprep.subr.mxu0 0.0
        %374 = vmatpush1.msra.mxu0 0.0
        %375 = vmatprep.subr.mxu0 0.0
        %376 = vmatpush1.msra.mxu0 0.0
        %377 = vmatprep.subr.mxu0 0.0
        %378 = vmatpush1.msra.mxu0 0.0
        %379 = vmatprep.subr.mxu0 0.0
        %380 = vmatpush1.msra.mxu0 0.0
        %381 = vmatprep.subr.mxu0 0.0
        %382 = vmatpush1.msra.mxu0 0.0
        %383 = vmatprep.subr.mxu0 0.0
        %384 = vmatpush1.msra.mxu0 0.0
        %385 = vmatprep.subr.mxu0 0.0
        %386 = vmatpush1.msra.mxu0 0.0
        %387 = vmatprep.subr.mxu0 0.0
        %388 = vmatpush1.msra.mxu0 0.0
        %389 = vmatprep.subr.mxu0 0.0
        %390 = vmatpush1.msra.mxu0 0.0
        %391 = vmatprep.subr.mxu0 0.0
        %392 = vmatpush1.msra.mxu0 0.0
        %393 = vmatprep.subr.mxu0 0.0
        %394 = vmatpush1.msra.mxu0 0.0
        %395 = vmatprep.subr.mxu0 0.0
        %396 = vmatpush1.msra.mxu0 0.0
        %397 = vmatprep.subr.mxu0 0.0
        %398 = vmatpush1.msra.mxu0 0.0
        %399 = vmatprep.subr.mxu0 0.0
        %400 = vmatpush1.msra.mxu0 0.0
        %401 = vmatprep.subr.mxu0 0.0
        %402 = vmatpush1.msra.mxu0 0.0
        %403 = vmatprep.subr.mxu0 0.0
        %404 = vmatpush1.msra.mxu0 0.0
        %405 = vmatprep.subr.mxu0 0.0
        %406 = vmatpush1.msra.mxu0 0.0
        %407 = vmatprep.subr.mxu0 0.0
        %408 = vmatpush1.msra.mxu0 0.0
        %409 = vmatprep.subr.mxu0 0.0
        %410 = vmatpush1.msra.mxu0 0.0
        %411 = vmatprep.subr.mxu0 0.0
        %412 = vmatpush1.msra.mxu0 0.0
        %413 = vmatprep.subr.mxu0 0.0
        %414 = vmatpush1.msra.mxu0 0.0
        %415 = vmatprep.subr.mxu0 0.0
        %416 = vmatpush1.msra.mxu0 0.0
        %417 = vmatprep.subr.mxu0 0.0
        %418 = vmatpush1.msra.mxu0 0.0
        %419 = vmatprep.subr.mxu0 0.0
        %420 = vmatpush1.msra.mxu0 0.0
        %421 = vmatprep.subr.mxu0 0.0
        %422 = vmatpush1.msra.mxu0 0.0
        %423 = vmatprep.mubr.f32.mxu0 0.0
        %424 = vmatmul.mubr.f32.gmra.mrb[0].mxu0 %v354
        %v425 = vpop.f32.mrb[0].mxu0
        %v426 = vadd.f32 %v345, %v425
        %v427 = vpop.f32.mrb[0].mxu0
        %v428 = vadd.f32 %v345, %v427
        %429 = vmatprep.mubr.f32.mxu0 0.0
        %430 = vmatmul.mubr.f32.gmra.mrb[0].mxu0 %v357
        %v431 = vpop.f32.mrb[0].mxu0
        %v432 = vadd.f32 %v350, %v431
        %v433 = vpop.f32.mrb[0].mxu0
        %v434 = vadd.f32 %v350, %v433
        %435 = vdwg.mxu0
        %v436 = vmax.f32 %v426, 0.0
        %v437 = vmax.f32 %v428, 0.0
        %v438 = vmax.f32 %v432, 0.0
        %v439 = vmax.f32 %v434, 0.0
        %v440 = vld [vmem:[%s3] sm:$0xff]
        %v441 = vld [vmem:[%s3 + $0x8] sm:$0xff]
        %v442 = vld [vmem:[%s4] sm:$0xff]
        %v443 = vld [vmem:[%s4 + $0x8] sm:$0xff]
        %445 = vset.pattern.permute.xlu0 0
        %446 = vperm.xlu0 %445, %v442
        %v447 = vpop.permute.xlu0 %446
        %450 = vset.pattern.permute.xlu0 0
        %451 = vperm.xlu0 %450, %v443
        %v452 = vpop.permute.xlu0 %451
        %vm454 = vcmask 97280
        %v456 = vsel %vm454, %v440, 0
        %v459 = vsel %vm454, %v441, 0
        %vm461 = vcmask 1043456
        %v463 = vsel %vm461, %v438, 0
        %v466 = vsel %vm461, %v439, 0
        %468 = vmatprep.subr.mxu0 %v437
        %469 = vmatpush1.msra.mxu0 %v436
        %470 = vmatprep.subr.mxu0 %v466
        %471 = vmatpush1.msra.mxu0 %v463
        %472 = vmatprep.subr.mxu0 0.0
        %473 = vmatpush1.msra.mxu0 0.0
        %474 = vmatprep.subr.mxu0 0.0
        %475 = vmatpush1.msra.mxu0 0.0
        %476 = vmatprep.subr.mxu0 0.0
        %477 = vmatpush1.msra.mxu0 0.0
        %478 = vmatprep.subr.mxu0 0.0
        %479 = vmatpush1.msra.mxu0 0.0
        %480 = vmatprep.subr.mxu0 0.0
        %481 = vmatpush1.msra.mxu0 0.0
        %482 = vmatprep.subr.mxu0 0.0
        %483 = vmatpush1.msra.mxu0 0.0
        %484 = vmatprep.subr.mxu0 0.0
        %485 = vmatpush1.msra.mxu0 0.0
        %486 = vmatprep.subr.mxu0 0.0
        %487 = vmatpush1.msra.mxu0 0.0
        %488 = vmatprep.subr.mxu0 0.0
        %489 = vmatpush1.msra.mxu0 0.0
        %490 = vmatprep.subr.mxu0 0.0
        %491 = vmatpush1.msra.mxu0 0.0
        %492 = vmatprep.subr.mxu0 0.0
        %493 = vmatpush1.msra.mxu0 0.0
        %494 = vmatprep.subr.mxu0 0.0
        %495 = vmatpush1.msra.mxu0 0.0
        %496 = vmatprep.subr.mxu0 0.0
        %497 = vmatpush1.msra.mxu0 0.0
        %498 = vmatprep.subr.mxu0 0.0
        %499 = vmatpush1.msra.mxu0 0.0
        %500 = vmatprep.subr.mxu0 0.0
        %501 = vmatpush1.msra.mxu0 0.0
        %502 = vmatprep.subr.mxu0 0.0
        %503 = vmatpush1.msra.mxu0 0.0
        %504 = vmatprep.subr.mxu0 0.0
        %505 = vmatpush1.msra.mxu0 0.0
        %506 = vmatprep.subr.mxu0 0.0
        %507 = vmatpush1.msra.mxu0 0.0
        %508 = vmatprep.subr.mxu0 0.0
        %509 = vmatpush1.msra.mxu0 0.0
        %510 = vmatprep.subr.mxu0 0.0
        %511 = vmatpush1.msra.mxu0 0.0
        %512 = vmatprep.subr.mxu0 0.0
        %513 = vmatpush1.msra.mxu0 0.0
        %514 = vmatprep.subr.mxu0 0.0
        %515 = vmatpush1.msra.mxu0 0.0
        %516 = vmatprep.subr.mxu0 0.0
        %517 = vmatpush1.msra.mxu0 0.0
        %518 = vmatprep.subr.mxu0 0.0
        %519 = vmatpush1.msra.mxu0 0.0
        %520 = vmatprep.subr.mxu0 0.0
        %521 = vmatpush1.msra.mxu0 0.0
        %522 = vmatprep.subr.mxu0 0.0
        %523 = vmatpush1.msra.mxu0 0.0
        %524 = vmatprep.subr.mxu0 0.0
        %525 = vmatpush1.msra.mxu0 0.0
        %526 = vmatprep.subr.mxu0 0.0
        %527 = vmatpush1.msra.mxu0 0.0
        %528 = vmatprep.subr.mxu0 0.0
        %529 = vmatpush1.msra.mxu0 0.0
        %530 = vmatprep.subr.mxu0 0.0
        %531 = vmatpush1.msra.mxu0 0.0
        %532 = vmatprep.mubr.f32.mxu0 0.0
        %533 = vmatmul.mubr.f32.gmra.mrb[0].mxu0 %v456
        %v534 = vpop.f32.mrb[0].mxu0
        %v535 = vadd.f32 %v447, %v534
        %v536 = vpop.f32.mrb[0].mxu0
        %v537 = vadd.f32 %v447, %v536
        %538 = vmatprep.mubr.f32.mxu0 0.0
        %539 = vmatmul.mubr.f32.gmra.mrb[0].mxu0 %v459
        %v540 = vpop.f32.mrb[0].mxu0
        %v541 = vadd.f32 %v452, %v540
        %v542 = vpop.f32.mrb[0].mxu0
        %v543 = vadd.f32 %v452, %v542
        %544 = vdwg.mxu0
        %v545 = vmax.f32 %v535, 0.0
        %v546 = vmax.f32 %v537, 0.0
        %v547 = vmax.f32 %v541, 0.0
        %v548 = vmax.f32 %v543, 0.0
        %v549 = vld [vmem:[%s5] sm:$0xff]
        %v550 = vld [vmem:[%s6] sm:$0xff]
        %552 = vset.pattern.permute.xlu0 0
        %553 = vperm.xlu0 %552, %v550
        %v554 = vpop.permute.xlu0 %553
        %vm556 = vcmask 130048
        %v558 = vsel %vm556, %v549, 0
        %560 = vmatprep.subr.mxu0 %v546
        %561 = vmatpush1.msra.mxu0 %v545
        %562 = vmatprep.subr.mxu0 %v548
        %563 = vmatpush1.msra.mxu0 %v547
        %564 = vmatprep.subr.mxu0 0.0
        %565 = vmatpush1.msra.mxu0 0.0
        %566 = vmatprep.subr.mxu0 0.0
        %567 = vmatpush1.msra.mxu0 0.0
        %568 = vmatprep.subr.mxu0 0.0
        %569 = vmatpush1.msra.mxu0 0.0
        %570 = vmatprep.subr.mxu0 0.0
        %571 = vmatpush1.msra.mxu0 0.0
        %572 = vmatprep.subr.mxu0 0.0
        %573 = vmatpush1.msra.mxu0 0.0
        %574 = vmatprep.subr.mxu0 0.0
        %575 = vmatpush1.msra.mxu0 0.0
        %576 = vmatprep.subr.mxu0 0.0
        %577 = vmatpush1.msra.mxu0 0.0
        %578 = vmatprep.subr.mxu0 0.0
        %579 = vmatpush1.msra.mxu0 0.0
        %580 = vmatprep.subr.mxu0 0.0
        %581 = vmatpush1.msra.mxu0 0.0
        %582 = vmatprep.subr.mxu0 0.0
        %583 = vmatpush1.msra.mxu0 0.0
        %584 = vmatprep.subr.mxu0 0.0
        %585 = vmatpush1.msra.mxu0 0.0
        %586 = vmatprep.subr.mxu0 0.0
        %587 = vmatpush1.msra.mxu0 0.0
        %588 = vmatprep.subr.mxu0 0.0
        %589 = vmatpush1.msra.mxu0 0.0
        %590 = vmatprep.subr.mxu0 0.0
        %591 = vmatpush1.msra.mxu0 0.0
        %592 = vmatprep.subr.mxu0 0.0
        %593 = vmatpush1.msra.mxu0 0.0
        %594 = vmatprep.subr.mxu0 0.0
        %595 = vmatpush1.msra.mxu0 0.0
        %596 = vmatprep.subr.mxu0 0.0
        %597 = vmatpush1.msra.mxu0 0.0
        %598 = vmatprep.subr.mxu0 0.0
        %599 = vmatpush1.msra.mxu0 0.0
        %600 = vmatprep.subr.mxu0 0.0
        %601 = vmatpush1.msra.mxu0 0.0
        %602 = vmatprep.subr.mxu0 0.0
        %603 = vmatpush1.msra.mxu0 0.0
        %604 = vmatprep.subr.mxu0 0.0
        %605 = vmatpush1.msra.mxu0 0.0
        %606 = vmatprep.subr.mxu0 0.0
        %607 = vmatpush1.msra.mxu0 0.0
        %608 = vmatprep.subr.mxu0 0.0
        %609 = vmatpush1.msra.mxu0 0.0
        %610 = vmatprep.subr.mxu0 0.0
        %611 = vmatpush1.msra.mxu0 0.0
        %612 = vmatprep.subr.mxu0 0.0
        %613 = vmatpush1.msra.mxu0 0.0
        %614 = vmatprep.subr.mxu0 0.0
        %615 = vmatpush1.msra.mxu0 0.0
        %616 = vmatprep.subr.mxu0 0.0
        %617 = vmatpush1.msra.mxu0 0.0
        %618 = vmatprep.subr.mxu0 0.0
        %619 = vmatpush1.msra.mxu0 0.0
        %620 = vmatprep.subr.mxu0 0.0
        %621 = vmatpush1.msra.mxu0 0.0
        %622 = vmatprep.subr.mxu0 0.0
        %623 = vmatpush1.msra.mxu0 0.0
        %624 = vmatprep.mubr.f32.mxu0 0.0
        %625 = vmatmul.mubr.f32.gmra.mrb[0].mxu0 %v558
        %v626 = vpop.f32.mrb[0].mxu0
        %v627 = vadd.f32 %v554, %v626
        %v628 = vpop.f32.mrb[0].mxu0
        %v629 = vadd.f32 %v554, %v628
        %630 = vdwg.mxu0
        %v631 = vmax.f32 %v627, 0.0
        %v632 = vmax.f32 %v629, 0.0
        %v633 = vld [vmem:[%s7] sm:$0x1]
        %v634 = vld [vmem:[#allocation2] sm:$0x1]
        %636 = vset.pattern.permute.xlu0 0
        %637 = vperm.xlu0 %636, %v634
        %v638 = vpop.permute.xlu0 %637
        %v640 = vlaneseq
        %v641 = vshrl.u32 %v640, 7
        %v642 = vsub.s32 0, %v641
        %v643 = vrot.slane %v638, %v642
        %v645 = vsel %vm352, %v633, 0
        %647 = vmatprep.subr.mxu0 %v632
        %648 = vmatpush1.msra.mxu0 %v631
        %649 = vmatprep.subr.mxu0 0.0
        %650 = vmatpush1.msra.mxu0 0.0
        %651 = vmatprep.subr.mxu0 0.0
        %652 = vmatpush1.msra.mxu0 0.0
        %653 = vmatprep.subr.mxu0 0.0
        %654 = vmatpush1.msra.mxu0 0.0
        %655 = vmatprep.subr.mxu0 0.0
        %656 = vmatpush1.msra.mxu0 0.0
        %657 = vmatprep.subr.mxu0 0.0
        %658 = vmatpush1.msra.mxu0 0.0
        %659 = vmatprep.subr.mxu0 0.0
        %660 = vmatpush1.msra.mxu0 0.0
        %661 = vmatprep.subr.mxu0 0.0
        %662 = vmatpush1.msra.mxu0 0.0
        %663 = vmatprep.subr.mxu0 0.0
        %664 = vmatpush1.msra.mxu0 0.0
        %665 = vmatprep.subr.mxu0 0.0
        %666 = vmatpush1.msra.mxu0 0.0
        %667 = vmatprep.subr.mxu0 0.0
        %668 = vmatpush1.msra.mxu0 0.0
        %669 = vmatprep.subr.mxu0 0.0
        %670 = vmatpush1.msra.mxu0 0.0
        %671 = vmatprep.subr.mxu0 0.0
        %672 = vmatpush1.msra.mxu0 0.0
        %673 = vmatprep.subr.mxu0 0.0
        %674 = vmatpush1.msra.mxu0 0.0
        %675 = vmatprep.subr.mxu0 0.0
        %676 = vmatpush1.msra.mxu0 0.0
        %677 = vmatprep.subr.mxu0 0.0
        %678 = vmatpush1.msra.mxu0 0.0
        %679 = vmatprep.subr.mxu0 0.0
        %680 = vmatpush1.msra.mxu0 0.0
        %681 = vmatprep.subr.mxu0 0.0
        %682 = vmatpush1.msra.mxu0 0.0
        %683 = vmatprep.subr.mxu0 0.0
        %684 = vmatpush1.msra.mxu0 0.0
        %685 = vmatprep.subr.mxu0 0.0
        %686 = vmatpush1.msra.mxu0 0.0
        %687 = vmatprep.subr.mxu0 0.0
        %688 = vmatpush1.msra.mxu0 0.0
        %689 = vmatprep.subr.mxu0 0.0
        %690 = vmatpush1.msra.mxu0 0.0
        %691 = vmatprep.subr.mxu0 0.0
        %692 = vmatpush1.msra.mxu0 0.0
        %693 = vmatprep.subr.mxu0 0.0
        %694 = vmatpush1.msra.mxu0 0.0
        %695 = vmatprep.subr.mxu0 0.0
        %696 = vmatpush1.msra.mxu0 0.0
        %697 = vmatprep.subr.mxu0 0.0
        %698 = vmatpush1.msra.mxu0 0.0
        %699 = vmatprep.subr.mxu0 0.0
        %700 = vmatpush1.msra.mxu0 0.0
        %701 = vmatprep.subr.mxu0 0.0
        %702 = vmatpush1.msra.mxu0 0.0
        %703 = vmatprep.subr.mxu0 0.0
        %704 = vmatpush1.msra.mxu0 0.0
        %705 = vmatprep.subr.mxu0 0.0
        %706 = vmatpush1.msra.mxu0 0.0
        %707 = vmatprep.subr.mxu0 0.0
        %708 = vmatpush1.msra.mxu0 0.0
        %709 = vmatprep.subr.mxu0 0.0
        %710 = vmatpush1.msra.mxu0 0.0
        %711 = vmatprep.mubr.f32.mxu0 0.0
        %712 = vmatmul.mubr.f32.gmra.mrb[0].mxu0 %v645
        %v713 = vpop.f32.mrb[0].mxu0
        %v714 = vadd.f32 %v643, %v713
        %v715 = vpop.f32.mrb[0].mxu0
        %v716 = vadd.f32 %v643, %v715
        %717 = vdwg.mxu0
        %v718 = vxor.u32 %v714, 2147483648
        %v719 = vxor.u32 %v716, 2147483648
        %v720 = vmul.f32 %v718, 1.442695
        %v721 = vpow.pop %v720
        %v722 = vmul.f32 %v719, 1.442695
        %v723 = vpow.pop %v722
        %v724 = vadd.f32 %v721, 1.0
        %v725 = vadd.f32 %v723, 1.0
        %v726 = vrcp.pop %v724
        %v727 = vmul.f32 1.0, %v726
        %v728 = vrcp.pop %v725
        %v729 = vmul.f32 1.0, %v728
        %v732 = vcombine.low %v727, %v729
        %v734 = vunpack.c.l.s4 1966171168
        %v735 = vunpack.c.0.s8 %v734
        %v736 = vlaneseq
        %v737 = vshrl.u32 %v736, 7
        %v738 = vsub.s32 %v735, %v737
        %v739 = vrot.slane %v732, %v738
        %v741 = vunpack.c.l.s4 1966171168
        %v742 = vunpack.c.0.s8 %v741
        %v743 = vlaneseq
        %v744 = vshrl.u32 %v743, 7
        %v745 = vsub.s32 %v742, %v744
        %v746 = vrot.slane %v739, %v745
        %v748 = vlaneseq
        %vm749 = vcmp.ge.s32.totalorder %v748, 0
        %vm750 = vcmp.lt.s32.totalorder %v748, 256
        %vm751 = vmand %vm749, %vm750
        %752 = vst.msk [vmem:[%s328] sm:$0x3] %vm751, %v746
        %s753 = sand.u32 %s227, 1
        %s754 = scalar_lea.sflag [#allocation4], %s753
        %s755 = sand.u32 %s227, 1
        %s756 = smul.addr %s755, 2
        %s757 = scalar_lea.vmem [#allocation3], %s756
        // Predicated region
        $region57: #{tpu_custom_call.1} parent=55 // pred_check
          %p758 = pneg %p237
        $region58: #{tpu_custom_call.1} parent=55 // pred_check_branch
          %760 = sbr.rel (%p758) target = $region60
        $region59: #{tpu_custom_call.1} parent=55 // pred_region
          %s761 = smul.u32 2, %s25
          %s763 = ssub.s32 32, 32
          %764 = vsyncadd %s754, %s763
          %s765 = smul.addr %s761, 16
          %s766 = scalar_lea.hbm %s9, %s765
          %s768 = sshll.u32 %s757, 4
          %s769 = int_to_ptr.vmem [resolvable:$true] %s768
          %771 = dma.vmem_to_hbm [thread:$0]  %s769, 32, %s766, %s754
        $region60: #{tpu_custom_call.1} parent=55 // pred_fallthru
          _
      $region56: #{tpu_custom_call.1} parent=5 // pred_fallthru
        _
      %p772 = scmp.le.s32.totalorder 2, %s20
      // Predicated region
      $region61: #{tpu_custom_call.1} parent=5 // pred_check
        %p773 = pneg %p772
      $region62: #{tpu_custom_call.1} parent=5 // pred_check_branch
        %775 = sbr.rel (%p773) target = $region64
      $region63: #{tpu_custom_call.1} parent=5 // pred_region
        %s776 = ssub.s32 %s20, 2
        // Predicated region
        $region65: #{tpu_custom_call.1} parent=63 // pred_check
          %p777 = pneg %p243
        $region66: #{tpu_custom_call.1} parent=63 // pred_check_branch
          %779 = sbr.rel (%p777) target = $region68
        $region67: #{tpu_custom_call.1} parent=63 // pred_region
          %s780 = sand.u32 %s228, 1
          %s781 = scalar_lea.sflag [#allocation4], %s780
          %s782 = sand.u32 %s228, 1
          %s783 = smul.addr %s782, 2
          %s784 = scalar_lea.vmem [#allocation3], %s783
          %785 = dma.done %s781, 32
        $region68: #{tpu_custom_call.1} parent=63 // pred_fallthru
          _
      $region64: #{tpu_custom_call.1} parent=5 // pred_fallthru
        _
    $region6: #{tpu_custom_call.1} parent=1 // loop_footer
      %s24 = sadd.s32 1, %s20
    $region7: #{tpu_custom_call.1} parent=1 // loop_footer_branch
      %19 = sbr.rel target = $region3
    $region8: #{tpu_custom_call.1} parent=1 // loop_exit
      _
    %786 = vsyncpa [#allocation4], 1
    %s787 = scalar_lea.sflag [#allocation4], 1
    %788 = vsyncpa %s787, 1

</llo_original>
